<compile_context>
chip_gen: v5e
topology: v5e:2x2
jax: 0.10.0
libtpu: 0.0.40
codegen_flags: <defaults>
</compile_context>

<pallas_src>
import jax
import jax.numpy as jnp
from jax import lax
from jax.experimental import pallas as pl
from jax.experimental.pallas import tpu as pltpu


def _invblock_kernel(x1_ref, x2_ref, w_ref, b_ref, y1_ref, y2_ref, stats_ref):
    # x1_ref/x2_ref: (Bt, 2C, S)   w_ref: (C, 2C)   b_ref: (C, 1)
    # y1_ref: (Bt, C, S)  y2_ref: (Bt, 2C, S)  stats_ref: (Bt, 2, 2C)  [mean; std]
    bt, c2, s = x1_ref.shape
    c = w_ref.shape[0]
    inv_s = 1.0 / s

    x1 = x1_ref[...]
    x2 = x2_ref[...]

    # --- one-pass per-(batch, channel) statistics, f32 accumulation ------------------
    sum_x = jnp.sum(x1, axis=-1, keepdims=True, dtype=jnp.float32)        # (Bt, 2C, 1)
    sum_xx = jnp.sum(x1 * x1, axis=-1, keepdims=True, dtype=jnp.float32)  # (Bt, 2C, 1)
    mean = sum_x * inv_s
    var = jnp.maximum(sum_xx * inv_s - mean * mean, 0.0)
    inv_std = lax.rsqrt(var)          # exact EUP rsqrt on a tiny vector
    std = jnp.sqrt(var)               # only 2C values; matches stdv_channels()

    # --- y2 = (x2 - mean) * inv_std ; y1 = x1 - y2 (all f32 via broadcast) ------------
    y2 = (x2 - mean) * inv_std
    y1 = x1 - y2

    # --- 1x1 conv over 2C channels ----------------------------------------------------
    if c2 <= 16:
        # Tiny channel count: 2C broadcast FMAs on the VPU (MXU would be <4% utilized).
        w_f = w_ref[...].astype(jnp.float32)
        acc = jnp.zeros((bt, c, s), jnp.float32)
        for ic in range(c2):
            acc = acc + w_f[:, ic][None, :, None] * y1[:, ic][:, None, :]
        y1c = acc + b_ref[...].astype(jnp.float32)[None]
    else:
        # MXU path; bf16 operands when the model runs bf16 (f32 accumulation kept).
        use_bf16 = x1_ref.dtype == jnp.bfloat16
        wv = w_ref[...].astype(jnp.bfloat16) if use_bf16 else w_ref[...].astype(jnp.float32)
        bias = b_ref[...].astype(jnp.float32)
        outs = []
        for bi in range(bt):
            rhs = y1[bi].astype(jnp.bfloat16) if use_bf16 else y1[bi]
            outs.append(jnp.dot(wv, rhs, preferred_element_type=jnp.float32) + bias)
        y1c = jnp.stack(outs, axis=0)

    y1_ref[...] = y1c.astype(y1_ref.dtype)
    y2_ref[...] = y2.astype(y2_ref.dtype)

    # Lane-dense stats: (Bt, 2, 2C) with mean in row 0, std in row 1.
    stats_ref[...] = jnp.stack([mean[:, :, 0], std[:, :, 0]], axis=1).astype(stats_ref.dtype)


def invblock_forward(x, conv_w, conv_b, *, vmem_step_budget=8 * 1024 * 1024):
    """x: (N, C, H, W); conv_w: (C, 2C, 1, 1); conv_b: (C,).

    Returns (y1, y2, mean, std) with the same shapes as the PyTorch module.
    """
    assert x.ndim == 4
    n, c, h, w = x.shape
    assert h % 2 == 0 and w % 2 == 0
    hs, ws = h // 2, w // 2
    s = hs * ws
    c2 = 2 * c
    assert conv_w.shape == (c, c2, 1, 1)
    assert conv_b.shape == (c,)

    # --- layout glue (pure slicing/reshape): 2x2 split + concat -----------------------
    # allow_input_fusion below lets XLA fuse this producer into the pallas call so
    # x1/x2 need not round-trip through HBM.
    xs1 = x[:, :, 0::2, 0::2]
    xs2 = x[:, :, 1::2, 0::2]
    xs3 = x[:, :, 0::2, 1::2]
    xs4 = x[:, :, 1::2, 1::2]
    x1 = jnp.concatenate([xs1, xs4], axis=1).reshape(n, c2, s)
    x2 = jnp.concatenate([xs2, xs3], axis=1).reshape(n, c2, s)

    w2d = conv_w.reshape(c, c2)
    b2d = conv_b.reshape(c, 1)

    itemsize = jnp.dtype(x.dtype).itemsize

    # --- batch-tile size: biggest divisor of N whose step working set fits the budget -
    #   (in+out blocks double-buffered) + f32 temporaries
    per_batch = (3 * c2 + c) * s * itemsize * 2 + 4 * c2 * s * 4
    bt = 1
    for cand in range(min(n, 8), 0, -1):
        if n % cand == 0 and cand * per_batch <= vmem_step_budget:
            bt = cand
            break
    grid = (n // bt,)

    flops = n * (6 * c2 * s + 2 * c * c2 * s)
    bytes_accessed = itemsize * (2 * n * c2 * s      # read x1, x2
                                 + c * c2 + c        # read w, b
                                 + n * c * s         # write y1
                                 + n * c2 * s        # write y2
                                 + 2 * n * c2)       # write mean/std

    y1c, y2, stats = pl.pallas_call(
        _invblock_kernel,
        out_shape=(
            jax.ShapeDtypeStruct((n, c, s), x.dtype),    # y1 (after conv)
            jax.ShapeDtypeStruct((n, c2, s), x.dtype),   # y2
            jax.ShapeDtypeStruct((n, 2, c2), x.dtype),   # [mean; std], lane-dense
        ),
        grid=grid,
        in_specs=[
            pl.BlockSpec((bt, c2, s), lambda i: (i, 0, 0)),   # x1 slab
            pl.BlockSpec((bt, c2, s), lambda i: (i, 0, 0)),   # x2 slab
            pl.BlockSpec((c, c2), lambda i: (0, 0)),          # conv weight (resident)
            pl.BlockSpec((c, 1), lambda i: (0, 0)),           # conv bias   (resident)
        ],
        out_specs=(
            pl.BlockSpec((bt, c, s), lambda i: (i, 0, 0)),
            pl.BlockSpec((bt, c2, s), lambda i: (i, 0, 0)),
            pl.BlockSpec((bt, 2, c2), lambda i: (i, 0, 0)),
        ),
        compiler_params=pltpu.CompilerParams(
            dimension_semantics=("parallel",),          # batch tiles independent
            vmem_limit_bytes=32 * 1024 * 1024,          # explicit scoped-VMEM limit
            allow_input_fusion=[True, True, False, False],
        ),
        cost_estimate=pl.CostEstimate(
            flops=flops, transcendentals=2 * n * c2, bytes_accessed=bytes_accessed),
    )(x1, x2, w2d, b2d)

    return (y1c.reshape(n, c, hs, ws),
            y2.reshape(n, c2, hs, ws),
            stats[:, 0, :].reshape(n, c2, 1, 1),
            stats[:, 1, :].reshape(n, c2, 1, 1))


def _invblock_ref(x, conv_w, conv_b):
    """Pure-JAX reference matching the PyTorch InvBlock.forward."""
    xs1 = x[:, :, 0::2, 0::2]
    xs2 = x[:, :, 1::2, 0::2]
    xs3 = x[:, :, 0::2, 1::2]
    xs4 = x[:, :, 1::2, 1::2]
    x1 = jnp.concatenate([xs1, xs4], axis=1)
    x2 = jnp.concatenate([xs2, xs3], axis=1)
    mean = jnp.mean(x1, axis=(2, 3), keepdims=True)
    var = jnp.mean((x1 - mean) ** 2, axis=(2, 3), keepdims=True)
    std = jnp.sqrt(var)
    y2 = (x2 - mean) / std
    y1 = x1 - y2
    y1c = jnp.einsum('oi,nihw->nohw', conv_w[:, :, 0, 0], y1)
    y1c = y1c + conv_b[None, :, None, None]
    return y1c, y2, mean, std


if __name__ == "__main__":
    key = jax.random.PRNGKey(0)
    k_x, k_w, k_b = jax.random.split(key, 3)

    # InvBlock(channel_num=4, channel_split_num=2) on a (2, 4, 16, 16) input.
    n, c, h, w = 2, 4, 16, 16
    x = jax.random.normal(k_x, (n, c, h, w), dtype=jnp.float32)
    conv_w = 0.1 * jax.random.normal(k_w, (c, 2 * c, 1, 1), dtype=jnp.float32)
    conv_b = 0.1 * jax.random.normal(k_b, (c,), dtype=jnp.float32)

    outs = invblock_forward(x, conv_w, conv_b)
    jax.block_until_ready(outs)

    refs = _invblock_ref(x, conv_w, conv_b)
    expected_shapes = ((n, c, h // 2, w // 2),
                       (n, 2 * c, h // 2, w // 2),
                       (n, 2 * c, 1, 1),
                       (n, 2 * c, 1, 1))
    for name, o, r, es in zip(("y1", "y2", "mean", "std"), outs, refs, expected_shapes):
        assert o.shape == es, (name, o.shape, es)
        assert jnp.allclose(o, r, atol=1e-4, rtol=1e-4), name

    print("KERNEL_OK")
</pallas_src>

<mosaic_0001>
module attributes {stable_mosaic.version = 11 : i64} {
  func.func @_invblock_kernel(%arg0: i32, %arg1: memref<2x8x64xf32, #tpu.memory_space<vmem>>, %arg2: memref<2x8x64xf32, #tpu.memory_space<vmem>>, %arg3: memref<4x8xf32, #tpu.memory_space<vmem>>, %arg4: memref<4x1xf32, #tpu.memory_space<vmem>>, %arg5: memref<2x4x64xf32, #tpu.memory_space<vmem>>, %arg6: memref<2x8x64xf32, #tpu.memory_space<vmem>>, %arg7: memref<2x2x8xf32, #tpu.memory_space<vmem>>) attributes {dimension_semantics = [#tpu.dimension_semantics<parallel>], iteration_bounds = array<i64: 1>, scalar_prefetch = 0 : i64, scratch_operands = 0 : i64, tpu.core_type = #tpu.core_type<tc>, window_params = [{transform_indices = @transform_0, window_bounds = array<i64: 2, 8, 64>}, {transform_indices = @transform_1, window_bounds = array<i64: 2, 8, 64>}, {pipeline_mode = #tpu.pipeline_mode<synchronous>, transform_indices = @transform_2, window_bounds = array<i64: 4, 8>}, {pipeline_mode = #tpu.pipeline_mode<synchronous>, transform_indices = @transform_3, window_bounds = array<i64: 4, 1>}, {transform_indices = @transform_4, window_bounds = array<i64: 2, 4, 64>}, {transform_indices = @transform_5, window_bounds = array<i64: 2, 8, 64>}, {transform_indices = @transform_6, window_bounds = array<i64: 2, 2, 8>}]} {
    %c0 = arith.constant 0 : index
    %c0_0 = arith.constant 0 : index
    %c0_1 = arith.constant 0 : index
    %0 = vector.load %arg1[%c0, %c0_0, %c0_1] : memref<2x8x64xf32, #tpu.memory_space<vmem>>, vector<2x8x64xf32>
    %c0_2 = arith.constant 0 : index
    %c0_3 = arith.constant 0 : index
    %c0_4 = arith.constant 0 : index
    %1 = vector.load %arg2[%c0_2, %c0_3, %c0_4] : memref<2x8x64xf32, #tpu.memory_space<vmem>>, vector<2x8x64xf32>
    %cst = arith.constant dense<0.000000e+00> : vector<2x8xf32>
    %2 = vector.multi_reduction <add>, %0, %cst [2] : vector<2x8x64xf32> to vector<2x8xf32>
    %3 = vector.shape_cast %2 : vector<2x8xf32> to vector<2x8x1xf32>
    %4 = arith.mulf %0, %0 : vector<2x8x64xf32>
    %cst_5 = arith.constant dense<0.000000e+00> : vector<2x8xf32>
    %5 = vector.multi_reduction <add>, %4, %cst_5 [2] : vector<2x8x64xf32> to vector<2x8xf32>
    %6 = vector.shape_cast %5 : vector<2x8xf32> to vector<2x8x1xf32>
    %cst_6 = arith.constant 1.562500e-02 : f32
    %7 = vector.broadcast %cst_6 : f32 to vector<2x8x1xf32>
    %8 = arith.mulf %3, %7 : vector<2x8x1xf32>
    %cst_7 = arith.constant 1.562500e-02 : f32
    %9 = vector.broadcast %cst_7 : f32 to vector<2x8x1xf32>
    %10 = arith.mulf %6, %9 : vector<2x8x1xf32>
    %11 = arith.mulf %8, %8 : vector<2x8x1xf32>
    %12 = arith.subf %10, %11 : vector<2x8x1xf32>
    %cst_8 = arith.constant 0.000000e+00 : f32
    %13 = vector.broadcast %cst_8 : f32 to vector<2x8x1xf32>
    %14 = arith.maximumf %12, %13 : vector<2x8x1xf32>
    %15 = math.rsqrt %14 : vector<2x8x1xf32>
    %16 = math.sqrt %14 : vector<2x8x1xf32>
    %17 = vector.broadcast %8 : vector<2x8x1xf32> to vector<2x8x64xf32>
    %18 = arith.subf %1, %17 : vector<2x8x64xf32>
    %19 = vector.broadcast %15 : vector<2x8x1xf32> to vector<2x8x64xf32>
    %20 = arith.mulf %18, %19 : vector<2x8x64xf32>
    %21 = arith.subf %0, %20 : vector<2x8x64xf32>
    %c0_9 = arith.constant 0 : index
    %c0_10 = arith.constant 0 : index
    %22 = vector.load %arg3[%c0_9, %c0_10] : memref<4x8xf32, #tpu.memory_space<vmem>>, vector<4x8xf32>
    %cst_11 = arith.constant 0.000000e+00 : f32
    %23 = vector.broadcast %cst_11 : f32 to vector<2x4x64xf32>
    %24 = vector.extract_strided_slice %22 {offsets = [0, 0], sizes = [4, 1], strides = [1, 1]} : vector<4x8xf32> to vector<4x1xf32>
    %25 = vector.shape_cast %24 : vector<4x1xf32> to vector<4xf32>
    %26 = vector.shape_cast %25 : vector<4xf32> to vector<1x4x1xf32>
    %27 = vector.extract_strided_slice %21 {offsets = [0, 0, 0], sizes = [2, 1, 64], strides = [1, 1, 1]} : vector<2x8x64xf32> to vector<2x1x64xf32>
    %28 = vector.shape_cast %27 : vector<2x1x64xf32> to vector<2x64xf32>
    %29 = vector.shape_cast %28 : vector<2x64xf32> to vector<2x1x64xf32>
    %30 = vector.broadcast %26 : vector<1x4x1xf32> to vector<2x4x64xf32>
    %31 = vector.broadcast %29 : vector<2x1x64xf32> to vector<2x4x64xf32>
    %32 = arith.mulf %30, %31 : vector<2x4x64xf32>
    %33 = arith.addf %23, %32 : vector<2x4x64xf32>
    %34 = vector.extract_strided_slice %22 {offsets = [0, 1], sizes = [4, 1], strides = [1, 1]} : vector<4x8xf32> to vector<4x1xf32>
    %35 = vector.shape_cast %34 : vector<4x1xf32> to vector<4xf32>
    %36 = vector.shape_cast %35 : vector<4xf32> to vector<1x4x1xf32>
    %37 = vector.extract_strided_slice %21 {offsets = [0, 1, 0], sizes = [2, 1, 64], strides = [1, 1, 1]} : vector<2x8x64xf32> to vector<2x1x64xf32>
    %38 = vector.shape_cast %37 : vector<2x1x64xf32> to vector<2x64xf32>
    %39 = vector.shape_cast %38 : vector<2x64xf32> to vector<2x1x64xf32>
    %40 = vector.broadcast %36 : vector<1x4x1xf32> to vector<2x4x64xf32>
    %41 = vector.broadcast %39 : vector<2x1x64xf32> to vector<2x4x64xf32>
    %42 = arith.mulf %40, %41 : vector<2x4x64xf32>
    %43 = arith.addf %33, %42 : vector<2x4x64xf32>
    %44 = vector.extract_strided_slice %22 {offsets = [0, 2], sizes = [4, 1], strides = [1, 1]} : vector<4x8xf32> to vector<4x1xf32>
    %45 = vector.shape_cast %44 : vector<4x1xf32> to vector<4xf32>
    %46 = vector.shape_cast %45 : vector<4xf32> to vector<1x4x1xf32>
    %47 = vector.extract_strided_slice %21 {offsets = [0, 2, 0], sizes = [2, 1, 64], strides = [1, 1, 1]} : vector<2x8x64xf32> to vector<2x1x64xf32>
    %48 = vector.shape_cast %47 : vector<2x1x64xf32> to vector<2x64xf32>
    %49 = vector.shape_cast %48 : vector<2x64xf32> to vector<2x1x64xf32>
    %50 = vector.broadcast %46 : vector<1x4x1xf32> to vector<2x4x64xf32>
    %51 = vector.broadcast %49 : vector<2x1x64xf32> to vector<2x4x64xf32>
    %52 = arith.mulf %50, %51 : vector<2x4x64xf32>
    %53 = arith.addf %43, %52 : vector<2x4x64xf32>
    %54 = vector.extract_strided_slice %22 {offsets = [0, 3], sizes = [4, 1], strides = [1, 1]} : vector<4x8xf32> to vector<4x1xf32>
    %55 = vector.shape_cast %54 : vector<4x1xf32> to vector<4xf32>
    %56 = vector.shape_cast %55 : vector<4xf32> to vector<1x4x1xf32>
    %57 = vector.extract_strided_slice %21 {offsets = [0, 3, 0], sizes = [2, 1, 64], strides = [1, 1, 1]} : vector<2x8x64xf32> to vector<2x1x64xf32>
    %58 = vector.shape_cast %57 : vector<2x1x64xf32> to vector<2x64xf32>
    %59 = vector.shape_cast %58 : vector<2x64xf32> to vector<2x1x64xf32>
    %60 = vector.broadcast %56 : vector<1x4x1xf32> to vector<2x4x64xf32>
    %61 = vector.broadcast %59 : vector<2x1x64xf32> to vector<2x4x64xf32>
    %62 = arith.mulf %60, %61 : vector<2x4x64xf32>
    %63 = arith.addf %53, %62 : vector<2x4x64xf32>
    %64 = vector.extract_strided_slice %22 {offsets = [0, 4], sizes = [4, 1], strides = [1, 1]} : vector<4x8xf32> to vector<4x1xf32>
    %65 = vector.shape_cast %64 : vector<4x1xf32> to vector<4xf32>
    %66 = vector.shape_cast %65 : vector<4xf32> to vector<1x4x1xf32>
    %67 = vector.extract_strided_slice %21 {offsets = [0, 4, 0], sizes = [2, 1, 64], strides = [1, 1, 1]} : vector<2x8x64xf32> to vector<2x1x64xf32>
    %68 = vector.shape_cast %67 : vector<2x1x64xf32> to vector<2x64xf32>
    %69 = vector.shape_cast %68 : vector<2x64xf32> to vector<2x1x64xf32>
    %70 = vector.broadcast %66 : vector<1x4x1xf32> to vector<2x4x64xf32>
    %71 = vector.broadcast %69 : vector<2x1x64xf32> to vector<2x4x64xf32>
    %72 = arith.mulf %70, %71 : vector<2x4x64xf32>
    %73 = arith.addf %63, %72 : vector<2x4x64xf32>
    %74 = vector.extract_strided_slice %22 {offsets = [0, 5], sizes = [4, 1], strides = [1, 1]} : vector<4x8xf32> to vector<4x1xf32>
    %75 = vector.shape_cast %74 : vector<4x1xf32> to vector<4xf32>
    %76 = vector.shape_cast %75 : vector<4xf32> to vector<1x4x1xf32>
    %77 = vector.extract_strided_slice %21 {offsets = [0, 5, 0], sizes = [2, 1, 64], strides = [1, 1, 1]} : vector<2x8x64xf32> to vector<2x1x64xf32>
    %78 = vector.shape_cast %77 : vector<2x1x64xf32> to vector<2x64xf32>
    %79 = vector.shape_cast %78 : vector<2x64xf32> to vector<2x1x64xf32>
    %80 = vector.broadcast %76 : vector<1x4x1xf32> to vector<2x4x64xf32>
    %81 = vector.broadcast %79 : vector<2x1x64xf32> to vector<2x4x64xf32>
    %82 = arith.mulf %80, %81 : vector<2x4x64xf32>
    %83 = arith.addf %73, %82 : vector<2x4x64xf32>
    %84 = vector.extract_strided_slice %22 {offsets = [0, 6], sizes = [4, 1], strides = [1, 1]} : vector<4x8xf32> to vector<4x1xf32>
    %85 = vector.shape_cast %84 : vector<4x1xf32> to vector<4xf32>
    %86 = vector.shape_cast %85 : vector<4xf32> to vector<1x4x1xf32>
    %87 = vector.extract_strided_slice %21 {offsets = [0, 6, 0], sizes = [2, 1, 64], strides = [1, 1, 1]} : vector<2x8x64xf32> to vector<2x1x64xf32>
    %88 = vector.shape_cast %87 : vector<2x1x64xf32> to vector<2x64xf32>
    %89 = vector.shape_cast %88 : vector<2x64xf32> to vector<2x1x64xf32>
    %90 = vector.broadcast %86 : vector<1x4x1xf32> to vector<2x4x64xf32>
    %91 = vector.broadcast %89 : vector<2x1x64xf32> to vector<2x4x64xf32>
    %92 = arith.mulf %90, %91 : vector<2x4x64xf32>
    %93 = arith.addf %83, %92 : vector<2x4x64xf32>
    %94 = vector.extract_strided_slice %22 {offsets = [0, 7], sizes = [4, 1], strides = [1, 1]} : vector<4x8xf32> to vector<4x1xf32>
    %95 = vector.shape_cast %94 : vector<4x1xf32> to vector<4xf32>
    %96 = vector.shape_cast %95 : vector<4xf32> to vector<1x4x1xf32>
    %97 = vector.extract_strided_slice %21 {offsets = [0, 7, 0], sizes = [2, 1, 64], strides = [1, 1, 1]} : vector<2x8x64xf32> to vector<2x1x64xf32>
    %98 = vector.shape_cast %97 : vector<2x1x64xf32> to vector<2x64xf32>
    %99 = vector.shape_cast %98 : vector<2x64xf32> to vector<2x1x64xf32>
    %100 = vector.broadcast %96 : vector<1x4x1xf32> to vector<2x4x64xf32>
    %101 = vector.broadcast %99 : vector<2x1x64xf32> to vector<2x4x64xf32>
    %102 = arith.mulf %100, %101 : vector<2x4x64xf32>
    %103 = arith.addf %93, %102 : vector<2x4x64xf32>
    %c0_12 = arith.constant 0 : index
    %c0_13 = arith.constant 0 : index
    %104 = vector.load %arg4[%c0_12, %c0_13] : memref<4x1xf32, #tpu.memory_space<vmem>>, vector<4x1xf32>
    %105 = vector.shape_cast %104 : vector<4x1xf32> to vector<1x4x1xf32>
    %106 = vector.broadcast %105 : vector<1x4x1xf32> to vector<2x4x64xf32>
    %107 = arith.addf %103, %106 : vector<2x4x64xf32>
    %c0_14 = arith.constant 0 : index
    %c0_15 = arith.constant 0 : index
    %c0_16 = arith.constant 0 : index
    %108 = vector.load %arg5[%c0_14, %c0_15, %c0_16] : memref<2x4x64xf32, #tpu.memory_space<vmem>>, vector<2x4x64xf32>
    tpu.vector_store %arg5[%c0_14, %c0_15, %c0_16], %107 {strides = array<i32>} : memref<2x4x64xf32, #tpu.memory_space<vmem>>, vector<2x4x64xf32>,
    %c0_17 = arith.constant 0 : index
    %c0_18 = arith.constant 0 : index
    %c0_19 = arith.constant 0 : index
    %109 = vector.load %arg6[%c0_17, %c0_18, %c0_19] : memref<2x8x64xf32, #tpu.memory_space<vmem>>, vector<2x8x64xf32>
    tpu.vector_store %arg6[%c0_17, %c0_18, %c0_19], %20 {strides = array<i32>} : memref<2x8x64xf32, #tpu.memory_space<vmem>>, vector<2x8x64xf32>,
    %110 = vector.shape_cast %8 : vector<2x8x1xf32> to vector<2x8xf32>
    %111 = vector.shape_cast %16 : vector<2x8x1xf32> to vector<2x8xf32>
    %112 = vector.shape_cast %110 : vector<2x8xf32> to vector<2x1x8xf32>
    %113 = vector.shape_cast %111 : vector<2x8xf32> to vector<2x1x8xf32>
    %114 = tpu.concatenate %112, %113 in 1 : vector<2x1x8xf32>, vector<2x1x8xf32> -> vector<2x2x8xf32>
    %c0_20 = arith.constant 0 : index
    %c0_21 = arith.constant 0 : index
    %c0_22 = arith.constant 0 : index
    %115 = vector.load %arg7[%c0_20, %c0_21, %c0_22] : memref<2x2x8xf32, #tpu.memory_space<vmem>>, vector<2x2x8xf32>
    tpu.vector_store %arg7[%c0_20, %c0_21, %c0_22], %114 {strides = array<i32>} : memref<2x2x8xf32, #tpu.memory_space<vmem>>, vector<2x2x8xf32>,
    return
  }
  func.func @transform_0(%arg0: i32) -> (i32, i32, i32) {
    %c0_i32 = arith.constant 0 : i32
    %c0_i32_0 = arith.constant 0 : i32
    %c0_i32_1 = arith.constant 0 : i32
    return %arg0, %c0_i32, %c0_i32_0 : i32, i32, i32
  }
  func.func @transform_1(%arg0: i32) -> (i32, i32, i32) {
    %c0_i32 = arith.constant 0 : i32
    %c0_i32_0 = arith.constant 0 : i32
    %c0_i32_1 = arith.constant 0 : i32
    return %arg0, %c0_i32, %c0_i32_0 : i32, i32, i32
  }
  func.func @transform_2(%arg0: i32) -> (i32, i32) {
    %c0_i32 = arith.constant 0 : i32
    %c0_i32_0 = arith.constant 0 : i32
    %c0_i32_1 = arith.constant 0 : i32
    return %c0_i32, %c0_i32_0 : i32, i32
  }
  func.func @transform_3(%arg0: i32) -> (i32, i32) {
    %c0_i32 = arith.constant 0 : i32
    %c0_i32_0 = arith.constant 0 : i32
    %c0_i32_1 = arith.constant 0 : i32
    return %c0_i32, %c0_i32_0 : i32, i32
  }
  func.func @transform_4(%arg0: i32) -> (i32, i32, i32) {
    %c0_i32 = arith.constant 0 : i32
    %c0_i32_0 = arith.constant 0 : i32
    %c0_i32_1 = arith.constant 0 : i32
    return %arg0, %c0_i32, %c0_i32_0 : i32, i32, i32
  }
  func.func @transform_5(%arg0: i32) -> (i32, i32, i32) {
    %c0_i32 = arith.constant 0 : i32
    %c0_i32_0 = arith.constant 0 : i32
    %c0_i32_1 = arith.constant 0 : i32
    return %arg0, %c0_i32, %c0_i32_0 : i32, i32, i32
  }
  func.func @transform_6(%arg0: i32) -> (i32, i32, i32) {
    %c0_i32 = arith.constant 0 : i32
    %c0_i32_0 = arith.constant 0 : i32
    %c0_i32_1 = arith.constant 0 : i32
    return %arg0, %c0_i32, %c0_i32_0 : i32, i32, i32
  }
}

</mosaic_0001>

<llo_original>
// kernel: tpu_custom_call.1
$region0: #{tpu_custom_call.1}
  #allocation0 [shape = 'u32[]', space=smem, size = 0x4, offset = 0x4, fixed_abs, tag = 'smem constant byte address 0x4 - core index']
  #allocation1 [shape = 'u32[72,128]{1,0:T(1,128)}', space=vmem, size = 0x9000, scoped, tag = 'internal scratch']
  %s0 = inlined_call_operand.hbm [shape: f32[2,8,64], index: 0, kind: input, shape index: {}]
  %s1 = inlined_call_operand.hbm [shape: f32[2,8,64], index: 1, kind: input, shape index: {}]
  %s2 = inlined_call_operand.vmem [shape: f32[4,8], index: 2, kind: input, shape index: {}]
  %s3 = inlined_call_operand.vmem [shape: f32[4,1], index: 3, kind: input, shape index: {}]
  %s4 = inlined_call_operand.hbm [shape: f32[2,4,64], index: 4, kind: output, shape index: {0}]
  %s5 = inlined_call_operand.hbm [shape: f32[2,8,64], index: 5, kind: output, shape index: {1}]
  %s6 = inlined_call_operand.hbm [shape: f32[2,2,8], index: 6, kind: output, shape index: {2}]
  %7 = xla_tuple %s4, %s5, %s6
  %s8 = sld [smem:[#allocation0]]
  $region50: #{tpu_custom_call.1} parent=0
    _
  %s10 = ssub.s32 1, %s8
  %s11 = scalar_select 0, %s10, %s8
  $region1: #{tpu_custom_call.1} parent=0
    #allocation2 [shape = 'u8[8192]{0}', space=vmem, size = 0x2000, scoped, tag = 'input window, operand 0, single buffered']
    #allocation3 [shape = 's32[1]{0}', space=sflag, size = 0x4, scoped, tag = 'scoped memory for tpu_custom_call.1']
    #allocation4 [shape = 's32[1]{0}', space=sflag, size = 0x4, scoped, tag = 'scoped memory for tpu_custom_call.1']
    #allocation5 [shape = 'u8[8192]{0}', space=vmem, size = 0x2000, scoped, tag = 'input window, operand 1, single buffered']
    #allocation6 [shape = 's32[1]{0}', space=sflag, size = 0x4, scoped, tag = 'scoped memory for tpu_custom_call.1']
    #allocation7 [shape = 'u8[4096]{0}', space=vmem, size = 0x1000, scoped, tag = 'output window, operand 0, single buffered']
    #allocation8 [shape = 'u8[8192]{0}', space=vmem, size = 0x2000, scoped, tag = 'output window, operand 1, single buffered']
    #allocation9 [shape = 's32[1]{0}', space=sflag, size = 0x4, scoped, tag = 'scoped memory for tpu_custom_call.1']
    #allocation10 [shape = 'u8[2048]{0}', space=vmem, size = 0x800, scoped, tag = 'output window, operand 2, single buffered']
    %12 = vsyncpa [#allocation3], 0
    %13 = vsyncpa [#allocation6], 0
    %14 = vsyncpa [#allocation4], 0
    %15 = vsyncpa [#allocation9], 0
    // Predicated region
    $region2: #{tpu_custom_call.1} parent=1 // pred_check
      _
    $region3: #{tpu_custom_call.1} parent=1 // pred_check_branch
      %17 = sbr.rel (0) target = $region5
    $region4: #{tpu_custom_call.1} parent=1 // pred_region
      %19 = vsyncadd [#allocation3], 0
      %s20 = sshll.u32 %s0, 4
      %s21 = int_to_ptr.hbm [resolvable:$true] %s20
      %s22 = sshll.u32 [#allocation2], 4
      %s23 = int_to_ptr.vmem [resolvable:$true] %s22
      %28 = dma.hbm_to_vmem [thread:$0]  %s21, 256, %s23, [#allocation3], 128, 128, 8
    $region5: #{tpu_custom_call.1} parent=1 // pred_fallthru
      _
    // Predicated region
    $region6: #{tpu_custom_call.1} parent=1 // pred_check
      _
    $region7: #{tpu_custom_call.1} parent=1 // pred_check_branch
      %30 = sbr.rel (0) target = $region9
    $region8: #{tpu_custom_call.1} parent=1 // pred_region
      %32 = vsyncadd [#allocation6], 0
      %s33 = sshll.u32 %s1, 4
      %s34 = int_to_ptr.hbm [resolvable:$true] %s33
      %s35 = sshll.u32 [#allocation5], 4
      %s36 = int_to_ptr.vmem [resolvable:$true] %s35
      %41 = dma.hbm_to_vmem [thread:$0]  %s34, 256, %s36, [#allocation6], 128, 128, 8
    $region9: #{tpu_custom_call.1} parent=1 // pred_fallthru
      _
    // Predicated region
    $region10: #{tpu_custom_call.1} parent=1 // pred_check
      _
    $region11: #{tpu_custom_call.1} parent=1 // pred_check_branch
      %43 = sbr.rel (0) target = $region13
    $region12: #{tpu_custom_call.1} parent=1 // pred_region
      _
    $region13: #{tpu_custom_call.1} parent=1 // pred_fallthru
      _
    // Predicated region
    $region14: #{tpu_custom_call.1} parent=1 // pred_check
      _
    $region15: #{tpu_custom_call.1} parent=1 // pred_check_branch
      %45 = sbr.rel (0) target = $region17
    $region16: #{tpu_custom_call.1} parent=1 // pred_region
      _
    $region17: #{tpu_custom_call.1} parent=1 // pred_fallthru
      _
    // Predicated region
    $region18: #{tpu_custom_call.1} parent=1 // pred_check
      _
    $region19: #{tpu_custom_call.1} parent=1 // pred_check_branch
      %47 = sbr.rel (0) target = $region21
    $region20: #{tpu_custom_call.1} parent=1 // pred_region
      %49 = dma.done [#allocation3], 256
    $region21: #{tpu_custom_call.1} parent=1 // pred_fallthru
      _
    // Predicated region
    $region22: #{tpu_custom_call.1} parent=1 // pred_check
      _
    $region23: #{tpu_custom_call.1} parent=1 // pred_check_branch
      %51 = sbr.rel (0) target = $region25
    $region24: #{tpu_custom_call.1} parent=1 // pred_region
      %53 = dma.done [#allocation6], 256
    $region25: #{tpu_custom_call.1} parent=1 // pred_fallthru
      _
    %v54 = vld [vmem:[#allocation2] sm:$0xff]
    %v55 = vld [vmem:[#allocation2 + $0x8] sm:$0xff]
    %v56 = vld [vmem:[#allocation5] sm:$0xff]
    %v57 = vld [vmem:[#allocation5 + $0x8] sm:$0xff]
    %vm58 = vcmask 523264
    %v59 = vsel %vm58, %v54, 0.0
    %60 = vadd.xlane.f32.xlu0 %v59
    %v61 = vpop.xlane.xlu0 %60
    %v62 = vsel %vm58, %v55, 0.0
    %63 = vadd.xlane.f32.xlu0 %v62
    %v64 = vpop.xlane.xlu0 %63
    %v65 = vmul.f32 %v54, %v54
    %v66 = vmul.f32 %v55, %v55
    %v67 = vsel %vm58, %v65, 0.0
    %68 = vadd.xlane.f32.xlu0 %v67
    %v69 = vpop.xlane.xlu0 %68
    %v70 = vsel %vm58, %v66, 0.0
    %71 = vadd.xlane.f32.xlu0 %v70
    %v72 = vpop.xlane.xlu0 %71
    %v73 = vmul.f32 %v61, 0.015625
    %v74 = vmul.f32 %v64, 0.015625
    %v75 = vmul.f32 %v69, 0.015625
    %v76 = vmul.f32 %v72, 0.015625
    %v77 = vmul.f32 %v73, %v73
    %v78 = vmul.f32 %v74, %v74
    %v79 = vsub.f32 %v75, %v77
    %v80 = vsub.f32 %v76, %v78
    %v81 = vmax.f32 %v79, 0.0
    %v82 = vmax.f32 %v80, 0.0
    %v83 = vrsqrt.pop %v81
    %v84 = vmul.f32 %v83, %v81
    %v85 = vmul.f32 %v84, %v83
    %v86 = vmul.f32 0.5, %v85
    %v87 = vsub.f32 1.5, %v86
    %v88 = vmul.f32 %v83, %v87
    %vm89 = vweird.f32 %v81
    %vm90 = vweird.f32 %v83
    %vm91 = vmor %vm89, %vm90
    %v92 = vsel %vm91, %v83, %v88
    %v93 = vrsqrt.pop %v82
    %v94 = vmul.f32 %v93, %v82
    %v95 = vmul.f32 %v94, %v93
    %v96 = vmul.f32 0.5, %v95
    %v97 = vsub.f32 1.5, %v96
    %v98 = vmul.f32 %v93, %v97
    %vm99 = vweird.f32 %v82
    %vm100 = vweird.f32 %v93
    %vm101 = vmor %vm99, %vm100
    %v102 = vsel %vm101, %v93, %v98
    %v103 = vrsqrt.pop %v81
    %v104 = vmul.f32 %v103, %v81
    %v105 = vmul.f32 %v104, %v103
    %v106 = vmul.f32 0.5, %v105
    %v107 = vsub.f32 1.5, %v106
    %v108 = vmul.f32 %v103, %v107
    %v109 = vmul.f32 %v81, %v108
    %vm110 = vcmp.eq.f32.partialorder %v81, inf
    %v111 = vsel %vm110, %v81, %v109
    %vm112 = vcmp.eq.f32.partialorder %v81, 0.0
    %v113 = vand.u32 %v81, 2147483648
    %v114 = vsel %vm112, %v113, %v111
    %v115 = vrsqrt.pop %v82
    %v116 = vmul.f32 %v115, %v82
    %v117 = vmul.f32 %v116, %v115
    %v118 = vmul.f32 0.5, %v117
    %v119 = vsub.f32 1.5, %v118
    %v120 = vmul.f32 %v115, %v119
    %v121 = vmul.f32 %v82, %v120
    %vm122 = vcmp.eq.f32.partialorder %v82, inf
    %v123 = vsel %vm122, %v82, %v121
    %vm124 = vcmp.eq.f32.partialorder %v82, 0.0
    %v125 = vand.u32 %v82, 2147483648
    %v126 = vsel %vm124, %v125, %v123
    %v127 = vsub.f32 %v56, %v73
    %v128 = vsub.f32 %v57, %v74
    %v129 = vmul.f32 %v127, %v92
    %v130 = vmul.f32 %v128, %v102
    %v131 = vsub.f32 %v54, %v129
    %v132 = vsub.f32 %v55, %v130
    %v133 = vld [vmem:[%s2] sm:$0xf]
    %135 = vset.pattern.permute.xlu0 0
    %136 = vperm.xlu0 %135, %v133
    %v137 = vpop.permute.xlu0 %136
    %v139 = vperm.slane %v131, 0
    %v140 = vperm.slane %v132, 0
    %v141 = vmul.f32 %v137, %v139
    %v142 = vmul.f32 %v137, %v140
    %v143 = vadd.f32 %v141, 0.0
    %v144 = vadd.f32 %v142, 0.0
    %145 = vset.pattern.permute.xlu0 1
    %146 = vperm.xlu0 %145, %v133
    %v147 = vpop.permute.xlu0 %146
    %v149 = vperm.slane %v131, 1
    %v150 = vperm.slane %v132, 1
    %v151 = vmul.f32 %v147, %v149
    %v152 = vmul.f32 %v147, %v150
    %v153 = vadd.f32 %v143, %v151
    %v154 = vadd.f32 %v144, %v152
    %155 = vset.pattern.permute.xlu0 2
    %156 = vperm.xlu0 %155, %v133
    %v157 = vpop.permute.xlu0 %156
    %v159 = vperm.slane %v131, 2
    %v160 = vperm.slane %v132, 2
    %v161 = vmul.f32 %v157, %v159
    %v162 = vmul.f32 %v157, %v160
    %v163 = vadd.f32 %v153, %v161
    %v164 = vadd.f32 %v154, %v162
    %165 = vset.pattern.permute.xlu0 3
    %166 = vperm.xlu0 %165, %v133
    %v167 = vpop.permute.xlu0 %166
    %v169 = vperm.slane %v131, 3
    %v170 = vperm.slane %v132, 3
    %v171 = vmul.f32 %v167, %v169
    %v172 = vmul.f32 %v167, %v170
    %v173 = vadd.f32 %v163, %v171
    %v174 = vadd.f32 %v164, %v172
    %175 = vset.pattern.permute.xlu0 4
    %176 = vperm.xlu0 %175, %v133
    %v177 = vpop.permute.xlu0 %176
    %v179 = vperm.slane %v131, 4
    %v180 = vperm.slane %v132, 4
    %v181 = vmul.f32 %v177, %v179
    %v182 = vmul.f32 %v177, %v180
    %v183 = vadd.f32 %v173, %v181
    %v184 = vadd.f32 %v174, %v182
    %185 = vset.pattern.permute.xlu0 5
    %186 = vperm.xlu0 %185, %v133
    %v187 = vpop.permute.xlu0 %186
    %v189 = vperm.slane %v131, 5
    %v190 = vperm.slane %v132, 5
    %v191 = vmul.f32 %v187, %v189
    %v192 = vmul.f32 %v187, %v190
    %v193 = vadd.f32 %v183, %v191
    %v194 = vadd.f32 %v184, %v192
    %195 = vset.pattern.permute.xlu0 6
    %196 = vperm.xlu0 %195, %v133
    %v197 = vpop.permute.xlu0 %196
    %v199 = vperm.slane %v131, 6
    %v200 = vperm.slane %v132, 6
    %v201 = vmul.f32 %v197, %v199
    %v202 = vmul.f32 %v197, %v200
    %v203 = vadd.f32 %v193, %v201
    %v204 = vadd.f32 %v194, %v202
    %205 = vset.pattern.permute.xlu0 7
    %206 = vperm.xlu0 %205, %v133
    %v207 = vpop.permute.xlu0 %206
    %v209 = vperm.slane %v131, 7
    %v210 = vperm.slane %v132, 7
    %v211 = vmul.f32 %v207, %v209
    %v212 = vmul.f32 %v207, %v210
    %v213 = vadd.f32 %v203, %v211
    %v214 = vadd.f32 %v204, %v212
    %v215 = vld [vmem:[%s3] sm:$0xf]
    %217 = vset.pattern.permute.xlu0 0
    %218 = vperm.xlu0 %217, %v215
    %v219 = vpop.permute.xlu0 %218
    %v221 = vadd.f32 %v213, %v219
    %v222 = vadd.f32 %v214, %v219
    %vm223 = vcmask 519168
    %224 = vst.msk [vmem:[#allocation7] sm:$0xf] %vm223, %v221
    %225 = vst.msk [vmem:[#allocation7 + $0x4] sm:$0xf] %vm223, %v222
    %226 = vst.msk [vmem:[#allocation8] sm:$0xff] %vm58, %v129
    %227 = vst.msk [vmem:[#allocation8 + $0x8] sm:$0xff] %vm58, %v130
    %v230 = vlaneseq
    %v231 = vand.u32 %v230, 127
    %v232 = vperm.slane %v73, %v231
    %v233 = vperm.slane %v74, %v231
    %v238 = vperm.slane %v114, %v231
    %v239 = vperm.slane %v126, %v231
    %vm242 = vcmask 1040384
    %v243 = vsel %vm242, %v232, %v238
    %v244 = vsel %vm242, %v233, %v239
    %vm245 = vcmask 58368
    %246 = vst.msk [vmem:[#allocation10] sm:$0x3] %vm245, %v243
    %247 = vst.msk [vmem:[#allocation10 + $0x2] sm:$0x3] %vm245, %v244
    // Predicated region
    $region26: #{tpu_custom_call.1} parent=1 // pred_check
      _
    $region27: #{tpu_custom_call.1} parent=1 // pred_check_branch
      %249 = sbr.rel (0) target = $region29
    $region28: #{tpu_custom_call.1} parent=1 // pred_region
      %251 = vsyncadd [#allocation4], 0
      %s252 = sshll.u32 [#allocation7], 4
      %s253 = int_to_ptr.vmem [resolvable:$true] %s252
      %s254 = sshll.u32 %s4, 4
      %s255 = int_to_ptr.hbm [resolvable:$true] %s254
      %260 = dma.vmem_to_hbm [thread:$0]  %s253, 128, %s255, [#allocation4], 64, 64, 4
    $region29: #{tpu_custom_call.1} parent=1 // pred_fallthru
      _
    // Predicated region
    $region30: #{tpu_custom_call.1} parent=1 // pred_check
      _
    $region31: #{tpu_custom_call.1} parent=1 // pred_check_branch
      %262 = sbr.rel (0) target = $region33
    $region32: #{tpu_custom_call.1} parent=1 // pred_region
      %264 = vsyncadd [#allocation9], 0
      %s265 = sshll.u32 [#allocation8], 4
      %s266 = int_to_ptr.vmem [resolvable:$true] %s265
      %s267 = sshll.u32 %s5, 4
      %s268 = int_to_ptr.hbm [resolvable:$true] %s267
      %273 = dma.vmem_to_hbm [thread:$0]  %s266, 256, %s268, [#allocation9], 128, 128, 8
    $region33: #{tpu_custom_call.1} parent=1 // pred_fallthru
      _
    // Predicated region
    $region34: #{tpu_custom_call.1} parent=1 // pred_check
      _
    $region35: #{tpu_custom_call.1} parent=1 // pred_check_branch
      %275 = sbr.rel (0) target = $region37
    $region36: #{tpu_custom_call.1} parent=1 // pred_region
      %277 = vsyncadd [#allocation9], 0
      %s278 = sshll.u32 [#allocation10], 4
      %s279 = int_to_ptr.vmem [resolvable:$true] %s278
      %s280 = sshll.u32 %s6, 4
      %s281 = int_to_ptr.hbm [resolvable:$true] %s280
      %286 = dma.vmem_to_hbm [thread:$0]  %s279, 64, %s281, [#allocation9], 32, 32, 2
    $region37: #{tpu_custom_call.1} parent=1 // pred_fallthru
      _
    // Predicated region
    $region38: #{tpu_custom_call.1} parent=1 // pred_check
      _
    $region39: #{tpu_custom_call.1} parent=1 // pred_check_branch
      %288 = sbr.rel (0) target = $region41
    $region40: #{tpu_custom_call.1} parent=1 // pred_region
      %290 = dma.done [#allocation4], 128
    $region41: #{tpu_custom_call.1} parent=1 // pred_fallthru
      _
    // Predicated region
    $region42: #{tpu_custom_call.1} parent=1 // pred_check
      _
    $region43: #{tpu_custom_call.1} parent=1 // pred_check_branch
      %292 = sbr.rel (0) target = $region45
    $region44: #{tpu_custom_call.1} parent=1 // pred_region
      %294 = dma.done [#allocation9], 256
    $region45: #{tpu_custom_call.1} parent=1 // pred_fallthru
      _
    // Predicated region
    $region46: #{tpu_custom_call.1} parent=1 // pred_check
      _
    $region47: #{tpu_custom_call.1} parent=1 // pred_check_branch
      %296 = sbr.rel (0) target = $region49
    $region48: #{tpu_custom_call.1} parent=1 // pred_region
      %298 = dma.done [#allocation9], 64
    $region49: #{tpu_custom_call.1} parent=1 // pred_fallthru
      _
    %299 = vsyncpa [#allocation3], 1
    %300 = vsyncpa [#allocation6], 1
    %301 = vsyncpa [#allocation4], 1
    %302 = vsyncpa [#allocation9], 1

</llo_original>
